<compile_context>
chip_gen: v5e
topology: v5e:2x2
jax: 0.10.0
libtpu: 0.0.40
codegen_flags: <defaults>
</compile_context>

<pallas_src>
import functools

import jax
import jax.numpy as jnp
from jax.experimental import pallas as pl
from jax.experimental.pallas import tpu as pltpu

_LANE = 128
_K_ALIGN = 512   # preferred K tile; prep pads K to this granularity when needed


def _linear_kernel(x_ref, wt_ref, b_ref, o_ref, acc_ref):
    """Tiled matmul with K-reduction (grid = (M, N, K), K last/arbitrary)."""
    k = pl.program_id(2)
    prod = jnp.dot(x_ref[...], wt_ref[...], preferred_element_type=jnp.float32)

    @pl.when(k == 0)
    def _first():
        # First K step writes directly: no zero-init + reload round trip.
        acc_ref[...] = prod

    @pl.when(k != 0)
    def _accumulate():
        acc_ref[...] += prod

    @pl.when(k == pl.num_programs(2) - 1)
    def _finalize():
        o_ref[...] = (acc_ref[...] + b_ref[...].astype(jnp.float32)).astype(
            o_ref.dtype
        )


def _linear_nok_kernel(x_ref, wt_ref, b_ref, o_ref):
    """Fused matmul + bias when there is no K reduction axis (single K block).

    Also used as the single-block (grid-less) fast-path kernel.
    """
    o_ref[...] = (
        jnp.dot(x_ref[...], wt_ref[...], preferred_element_type=jnp.float32)
        + b_ref[...].astype(jnp.float32)
    ).astype(o_ref.dtype)


def prepare_classifier_params(
    weight, bias, *, compute_dtype=jnp.bfloat16, lane=_LANE, k_align=_K_ALIGN
):
    """One-time (init/load-time) parameter prep — NOT in the per-call path.

    weight: [nclass, nhid] -> wt:  [Kp, Np]  (transposed once, bf16)
    bias:   [nclass]       -> b2d: [1,  Np]  (f32, used in the f32 epilogue)

    Np = nclass padded to a multiple of 128 so the kernel's output block is
    lane-dense (unmasked stores, full-tile writeback DMA).
    Kp = nhid padded (with zeros) to a multiple of k_align when nhid > k_align,
    so the K reduction never has a ragged block reading unspecified data.
    """
    nclass, nhid = weight.shape
    n_pad = (-nclass) % lane
    k_pad = 0 if nhid <= k_align else (-nhid) % k_align
    wt = jnp.transpose(weight)  # [nhid, nclass], materialized exactly once
    if n_pad or k_pad:
        wt = jnp.pad(wt, ((0, k_pad), (0, n_pad)))
    b = jnp.pad(bias, (0, n_pad)) if n_pad else bias
    return wt.astype(compute_dtype), b.reshape(1, -1).astype(jnp.float32)


def _pick_tile(dim, pref):
    # Full-extent block for small dims (always legal w.r.t. the (8,128) rule);
    # otherwise the lane/sublane-aligned preferred tile.
    return dim if dim <= pref else pref


@functools.partial(jax.jit, static_argnames=("nclass",))
def classifier_forward(x, wt, b2d, *, nclass):
    """x: [B, nhid]; wt: [Kp, Np] (bf16); b2d: [1, Np] (f32) -> [B, nclass] f32."""
    B, nhid = x.shape
    Kp, Np = wt.shape

    # Cast activations to the MXU compute dtype (weights already stored so).
    x = x.astype(wt.dtype)
    # Match the K padding done at prep time (zero cols x zero rows -> 0).
    if nhid < Kp:
        x = jnp.pad(x, ((0, 0), (0, Kp - nhid)))

    tm = _pick_tile(B, 256)
    tn = _pick_tile(Np, 512)
    tk = _pick_tile(Kp, _K_ALIGN)
    gm, gn, gk = pl.cdiv(B, tm), pl.cdiv(Np, tn), pl.cdiv(Kp, tk)

    out_dtype = jnp.float32  # pinned: output precision does not follow bf16 x

    if gm == 1 and gn == 1 and gk == 1:
        # Single-block fast path: no grid, no scratch, no pl.when — avoids the
        # pipeline prologue/epilogue and per-step bookkeeping for a problem
        # that is a single MXU op + bias add.
        out_padded = pl.pallas_call(
            _linear_nok_kernel,
            out_shape=jax.ShapeDtypeStruct((B, Np), out_dtype),
        )(x, wt, b2d)
    elif gk == 1:
        # K fits one tile: no accumulator scratch, no reduction grid axis.
        out_padded = pl.pallas_call(
            _linear_nok_kernel,
            out_shape=jax.ShapeDtypeStruct((B, Np), out_dtype),
            grid=(gm, gn),
            in_specs=[
                pl.BlockSpec((tm, tk), lambda i, j: (i, 0)),
                pl.BlockSpec((tk, tn), lambda i, j: (0, j),
                             pipeline_mode=pl.Buffered(3)),
                pl.BlockSpec((1, tn), lambda i, j: (0, j)),
            ],
            out_specs=pl.BlockSpec((tm, tn), lambda i, j: (i, j)),
            compiler_params=pltpu.CompilerParams(
                dimension_semantics=("parallel", "parallel")
            ),
        )(x, wt, b2d)
    else:
        out_padded = pl.pallas_call(
            _linear_kernel,
            out_shape=jax.ShapeDtypeStruct((B, Np), out_dtype),
            grid=(gm, gn, gk),
            in_specs=[
                pl.BlockSpec((tm, tk), lambda i, j, k: (i, k)),
                # Streamed weight tile: 3-deep buffering hides DMA jitter in
                # the bandwidth-bound (small-B) regime.
                pl.BlockSpec((tk, tn), lambda i, j, k: (k, j),
                             pipeline_mode=pl.Buffered(3)),
                # Bias indexed only by the N grid axis: not re-DMA'd per M/K.
                pl.BlockSpec((1, tn), lambda i, j, k: (0, j)),
            ],
            out_specs=pl.BlockSpec((tm, tn), lambda i, j, k: (i, j)),
            scratch_shapes=[pltpu.VMEM((tm, tn), jnp.float32)],
            compiler_params=pltpu.CompilerParams(
                dimension_semantics=("parallel", "parallel", "arbitrary")
            ),
        )(x, wt, b2d)

    # Drop lane padding (no-op slice when nclass is already a lane multiple).
    return out_padded[:, :nclass] if nclass != Np else out_padded


if __name__ == "__main__":
    key = jax.random.PRNGKey(0)

    def run_case(B, nhid, nclass, k0):
        kx, kw, kb = jax.random.split(k0, 3)

        # nn.Linear-style init: uniform in [-1/sqrt(nhid), 1/sqrt(nhid)].
        bound = 1.0 / (nhid ** 0.5)
        weight = jax.random.uniform(kw, (nclass, nhid), jnp.float32, -bound, bound)
        bias = jax.random.uniform(kb, (nclass,), jnp.float32, -bound, bound)
        x = jax.random.normal(kx, (B, nhid), jnp.float32)

        # One-time param prep (init/load time, outside the hot path).
        wt, b2d = prepare_classifier_params(weight, bias)

        out = jax.block_until_ready(classifier_forward(x, wt, b2d, nclass=nclass))

        # Reference with the same bf16-quantized operands, exact f32 math.
        xb = x.astype(jnp.bfloat16).astype(jnp.float32)
        wb = weight.astype(jnp.bfloat16).astype(jnp.float32)
        ref = jnp.dot(xb, wb.T, precision="highest") + bias

        assert out.shape == (B, nclass)
        assert out.dtype == jnp.float32
        assert jnp.allclose(out, ref, atol=1e-4, rtol=1e-4), float(
            jnp.max(jnp.abs(out - ref))
        )

    k_small, k_big = jax.random.split(key)
    # Tiny classifier (module-sized shapes): exercises the single-block path.
    run_case(4, 32, 8, k_small)
    # Moderate case: exercises the tiled path (padded K, 2 N blocks, K reduce).
    run_case(96, 700, 1000, k_big)

    print("KERNEL_OK")
</pallas_src>

<mosaic_0001>
module attributes {stable_mosaic.version = 11 : i64} {
  func.func @_linear_nok_kernel(%arg0: memref<4x32xbf16, #tpu.memory_space<vmem>>, %arg1: memref<32x128xbf16, #tpu.memory_space<vmem>>, %arg2: memref<1x128xf32, #tpu.memory_space<vmem>>, %arg3: memref<4x128xf32, #tpu.memory_space<vmem>>) attributes {dimension_semantics = [], scalar_prefetch = 0 : i64, scratch_operands = 0 : i64, tpu.core_type = #tpu.core_type<tc>} {
    %c0 = arith.constant 0 : index
    %c0_0 = arith.constant 0 : index
    %0 = vector.load %arg0[%c0, %c0_0] : memref<4x32xbf16, #tpu.memory_space<vmem>>, vector<4x32xbf16>
    %c0_1 = arith.constant 0 : index
    %c0_2 = arith.constant 0 : index
    %1 = vector.load %arg1[%c0_1, %c0_2] : memref<32x128xbf16, #tpu.memory_space<vmem>>, vector<32x128xbf16>
    %cst = arith.constant dense<0.000000e+00> : vector<4x128xf32>
    %2 = tpu.matmul %0, %1, %cst {dimension_numbers = #tpu.dot_dimension_numbers<[1], [0], [0], [1], [0, 0, 1, 1], [], []>} : vector<4x32xbf16>, vector<32x128xbf16>, vector<4x128xf32> -> vector<4x128xf32>
    %c0_3 = arith.constant 0 : index
    %c0_4 = arith.constant 0 : index
    %3 = vector.load %arg2[%c0_3, %c0_4] : memref<1x128xf32, #tpu.memory_space<vmem>>, vector<1x128xf32>
    %4 = vector.broadcast %3 : vector<1x128xf32> to vector<4x128xf32>
    %5 = arith.addf %2, %4 : vector<4x128xf32>
    %c0_5 = arith.constant 0 : index
    %c0_6 = arith.constant 0 : index
    %6 = vector.load %arg3[%c0_5, %c0_6] : memref<4x128xf32, #tpu.memory_space<vmem>>, vector<4x128xf32>
    tpu.vector_store %arg3[%c0_5, %c0_6], %5 {strides = array<i32>} : memref<4x128xf32, #tpu.memory_space<vmem>>, vector<4x128xf32>,
    return
  }
}

</mosaic_0001>

<llo_original>
// kernel: classifier_forward.1
$region0: #{classifier_forward.1}
  #allocation0 [shape = 'u32[]', space=smem, size = 0x4, offset = 0x4, fixed_abs, tag = 'smem constant byte address 0x4 - core index']
  #allocation1 [shape = 'u32[72,128]{1,0:T(1,128)}', space=vmem, size = 0x9000, scoped, tag = 'internal scratch']
  %s0 = inlined_call_operand.vmem [shape: bf16[4,32], index: 0, kind: input, shape index: {}]
  %s1 = inlined_call_operand.hbm [shape: bf16[32,128], index: 1, kind: input, shape index: {}]
  %s2 = inlined_call_operand.vmem [shape: f32[1,128], index: 2, kind: input, shape index: {}]
  %s3 = inlined_call_operand.hbm [shape: f32[4,128], index: 3, kind: output, shape index: {}]
  %s4 = sld [smem:[#allocation0]]
  $region26: #{classifier_forward.1} parent=0
    _
  %s6 = ssub.s32 1, %s4
  %s7 = scalar_select 0, %s6, %s4
  $region1: #{classifier_forward.1} parent=0
    #allocation2 [shape = 'u8[8192]{0}', space=vmem, size = 0x2000, scoped, tag = 'input window, operand 1, single buffered']
    #allocation3 [shape = 's32[1]{0}', space=sflag, size = 0x4, scoped, tag = 'scoped memory for classifier_forward.1']
    #allocation4 [shape = 's32[1]{0}', space=sflag, size = 0x4, scoped, tag = 'scoped memory for classifier_forward.1']
    #allocation5 [shape = 'u8[2048]{0}', space=vmem, size = 0x800, scoped, tag = 'output window, operand 0, single buffered']
    %8 = vsyncpa [#allocation3], 0
    %9 = vsyncpa [#allocation4], 0
    // Predicated region
    $region2: #{classifier_forward.1} parent=1 // pred_check
      _
    $region3: #{classifier_forward.1} parent=1 // pred_check_branch
      %11 = sbr.rel (0) target = $region5
    $region4: #{classifier_forward.1} parent=1 // pred_region
      _
    $region5: #{classifier_forward.1} parent=1 // pred_fallthru
      _
    // Predicated region
    $region6: #{classifier_forward.1} parent=1 // pred_check
      _
    $region7: #{classifier_forward.1} parent=1 // pred_check_branch
      %13 = sbr.rel (0) target = $region9
    $region8: #{classifier_forward.1} parent=1 // pred_region
      %15 = vsyncadd [#allocation3], 0
      %s16 = sshll.u32 %s1, 4
      %s17 = int_to_ptr.hbm [resolvable:$true] %s16
      %s18 = sshll.u32 [#allocation2], 4
      %s19 = int_to_ptr.vmem [resolvable:$true] %s18
      %24 = dma.hbm_to_vmem [thread:$0]  %s17, 256, %s19, [#allocation3], 64, 64, 4
    $region9: #{classifier_forward.1} parent=1 // pred_fallthru
      _
    // Predicated region
    $region10: #{classifier_forward.1} parent=1 // pred_check
      _
    $region11: #{classifier_forward.1} parent=1 // pred_check_branch
      %26 = sbr.rel (0) target = $region13
    $region12: #{classifier_forward.1} parent=1 // pred_region
      _
    $region13: #{classifier_forward.1} parent=1 // pred_fallthru
      _
    // Predicated region
    $region14: #{classifier_forward.1} parent=1 // pred_check
      _
    $region15: #{classifier_forward.1} parent=1 // pred_check_branch
      %28 = sbr.rel (0) target = $region17
    $region16: #{classifier_forward.1} parent=1 // pred_region
      %30 = dma.done [#allocation3], 256
    $region17: #{classifier_forward.1} parent=1 // pred_fallthru
      _
    %v32 = vld [vmem:[%s0] sm:$0x3]
    %v33 = vld [vmem:[#allocation2] sm:$0xf]
    %v34 = vld [vmem:[#allocation2 + $0x4] sm:$0xf]
    %v35 = vld [vmem:[#allocation2 + $0x8] sm:$0xf]
    %v36 = vld [vmem:[#allocation2 + $0xc] sm:$0xf]
    %v37 = vld [vmem:[%s2] sm:$0x1]
    %v39 = vperm.slane %v37, 0
    %v45 = vunpack.c.l.b16 %v33
    %v46 = vunpack.c.l.b16 %v34
    %v47 = vunpack.c.l.b16 %v35
    %v48 = vunpack.c.l.b16 %v36
    %v49 = vpack.c.b16 %v46, %v45
    %v50 = vpack.c.b16 %v48, %v47
    %vm53 = vcmask 261120
    %v55 = vsel %vm53, %v32, 0
    %57 = vmatpush.bf16.msra.mxu0 0
    %58 = vmatpush.bf16.msra.mxu0 0
    %59 = vmatpush.bf16.msra.mxu0 0
    %60 = vmatpush.bf16.msra.mxu0 0
    %61 = vmatpush.bf16.msra.mxu0 0
    %62 = vmatpush.bf16.msra.mxu0 0
    %63 = vmatpush.bf16.msra.mxu0 %v50
    %64 = vmatpush.bf16.msra.mxu0 %v49
    %65 = vmatmul.bf16.gmra.mxu0 %v55
    %v66 = vpop.f32.mrf.mxu0
    %v67 = vadd.f32 %v39, %v66
    %v68 = vpop.f32.mrf.mxu0
    %69 = vdwg.mxu0
    %70 = vst [vmem:[#allocation5] sm:$0xf] %v67
    // Predicated region
    $region18: #{classifier_forward.1} parent=1 // pred_check
      _
    $region19: #{classifier_forward.1} parent=1 // pred_check_branch
      %72 = sbr.rel (0) target = $region21
    $region20: #{classifier_forward.1} parent=1 // pred_region
      %74 = vsyncadd [#allocation4], 0
      %s76 = sshll.u32 [#allocation5], 4
      %s77 = int_to_ptr.vmem [resolvable:$true] %s76
      %s78 = sshll.u32 %s3, 4
      %s79 = int_to_ptr.hbm [resolvable:$true] %s78
      %81 = dma.vmem_to_hbm [thread:$0]  %s77, 64, %s79, [#allocation4]
    $region21: #{classifier_forward.1} parent=1 // pred_fallthru
      _
    // Predicated region
    $region22: #{classifier_forward.1} parent=1 // pred_check
      _
    $region23: #{classifier_forward.1} parent=1 // pred_check_branch
      %83 = sbr.rel (0) target = $region25
    $region24: #{classifier_forward.1} parent=1 // pred_region
      %85 = dma.done [#allocation4], 64
    $region25: #{classifier_forward.1} parent=1 // pred_fallthru
      _
    %86 = vsyncpa [#allocation3], 1
    %87 = vsyncpa [#allocation4], 1

</llo_original>
